<compile_context>
chip_gen: v5e
topology: v5e:2x2
jax: 0.10.0
libtpu: 0.0.40
codegen_flags: <defaults>
</compile_context>

<pallas_src>
import functools
import math

import jax
import jax.numpy as jnp
from jax import lax
from jax.experimental import pallas as pl
from jax.experimental.pallas import tpu as pltpu


# -----------------------------------------------------------------------------
# Pass 1: fused QKV projection (computed once, never recomputed per q-tile).
# -----------------------------------------------------------------------------
def _qkv_proj_kernel(x_ref, w_ref, b_ref, q_ref, k_ref, v_ref):
    E = q_ref.shape[-1]
    x = x_ref[...]                                              # (rows, E) bf16
    y = jnp.dot(x, w_ref[...], preferred_element_type=jnp.float32)
    y = y + b_ref[...]                                          # f32 bias add
    q_ref[...] = y[:, :E].astype(q_ref.dtype)
    k_ref[...] = y[:, E:2 * E].astype(k_ref.dtype)
    v_ref[...] = y[:, 2 * E:].astype(v_ref.dtype)


# -----------------------------------------------------------------------------
# Pass 2: flash attention over projected Q/K/V + output projection.
# -----------------------------------------------------------------------------
def _mha_flash_kernel(q_ref, k_ref, v_ref, wo_ref, bo_ref, o_ref,
                      m_scr, l_scr, acc_scr, *,
                      num_heads, head_dim, group_heads):
    H, Dh, g = num_heads, head_dim, group_heads
    tq, E = q_ref.shape
    gl = g * Dh                           # lanes per head-group (>=128 if E>128)
    n_groups = H // g
    ki = pl.program_id(2)
    cdtype = q_ref.dtype                  # bf16 matmul operands, f32 accumulation

    # --- first KV tile for this (batch, q-tile): reset online-softmax state.
    @pl.when(ki == 0)
    def _init():
        m_scr[...] = jnp.full(m_scr.shape, -jnp.inf, dtype=m_scr.dtype)
        l_scr[...] = jnp.zeros(l_scr.shape, dtype=l_scr.dtype)
        acc_scr[...] = jnp.zeros(acc_scr.shape, dtype=acc_scr.dtype)

    def group_body(gi):
        if isinstance(gi, int):
            lane0 = gi * gl                              # static (small-H path)
        else:
            lane0 = pl.multiple_of(gi * gl, gl)          # aligned dynamic slab
        qg = q_ref[:, pl.ds(lane0, gl)]                  # (tq, gl) bf16
        kg = k_ref[:, pl.ds(lane0, gl)]                  # (tk, gl)
        vg = v_ref[:, pl.ds(lane0, gl)]
        m_prev = m_scr[:, pl.ds(lane0, gl)]              # per-head value bcast
        l_prev = l_scr[:, pl.ds(lane0, gl)]
        acc_prev = acc_scr[:, pl.ds(lane0, gl)]

        m_parts, l_parts, acc_parts = [], [], []
        for hh in range(g):                              # static within-group loop
            lo, hi = hh * Dh, (hh + 1) * Dh
            qh, kh, vh = qg[:, lo:hi], kg[:, lo:hi], vg[:, lo:hi]
            # scores = q @ k^T (contract head dims), f32 accumulation on MXU.
            s = lax.dot_general(qh, kh, (((1,), (1,)), ((), ())),
                                preferred_element_type=jnp.float32)   # (tq, tk)
            m_p = m_prev[:, lo:lo + 1]                                 # (tq, 1)
            l_p = l_prev[:, lo:lo + 1]
            m_n = jnp.maximum(m_p, jnp.max(s, axis=-1, keepdims=True))
            alpha = jnp.exp(m_p - m_n)
            p = jnp.exp(s - m_n)                                       # f32
            l_n = alpha * l_p + jnp.sum(p, axis=-1, keepdims=True)
            pv = jnp.dot(p.astype(cdtype), vh,
                         preferred_element_type=jnp.float32)           # (tq, Dh)
            acc_n = alpha * acc_prev[:, lo:hi] + pv
            m_parts.append(jnp.broadcast_to(m_n, (tq, Dh)))
            l_parts.append(jnp.broadcast_to(l_n, (tq, Dh)))
            acc_parts.append(acc_n)

        def cat(parts):
            return parts[0] if len(parts) == 1 else jnp.concatenate(parts, axis=-1)

        # Lane-dense group-slab stores (no 1-lane masked column stores).
        m_scr[:, pl.ds(lane0, gl)] = cat(m_parts)
        l_scr[:, pl.ds(lane0, gl)] = cat(l_parts)
        acc_scr[:, pl.ds(lane0, gl)] = cat(acc_parts)

    if n_groups <= 2:
        # Small head count: fully static indexing.
        for gi in range(n_groups):
            group_body(gi)
    else:
        # Many heads: fori_loop bounds live ranges / vreg pressure.
        def loop_body(gi, carry):
            group_body(gi)
            return carry
        lax.fori_loop(0, n_groups, loop_body, 0,
                      unroll=2 if n_groups % 2 == 0 else 1)

    # --- last KV tile: single vectorized normalization + output projection.
    @pl.when(ki == pl.num_programs(2) - 1)
    def _finalize():
        inv_l = pl.reciprocal(l_scr[...], approx=True)       # (tq, E), bcast/head
        ctx = (acc_scr[...] * inv_l).astype(cdtype)
        out = jnp.dot(ctx, wo_ref[...], preferred_element_type=jnp.float32)
        o_ref[...] = (out + bo_ref[...]).astype(o_ref.dtype)


# -----------------------------------------------------------------------------
# Wrapper helpers.
# -----------------------------------------------------------------------------
def _pick_block(n, target):
    """Largest divisor of n that is <= target and a multiple of 8 (or == n)."""
    best = None
    for d in range(1, n + 1):
        if n % d == 0 and d <= target and (d % 8 == 0 or d == n):
            best = d
    return best if best is not None else n


def _pick_group_heads(num_heads, head_dim, embed_dim):
    """Heads per group so each group spans >=128 aligned lanes when possible."""
    if embed_dim <= 128:
        return num_heads                      # single group covering all lanes
    if head_dim >= 128:
        return 1                              # each head is already lane-dense
    if 128 % head_dim == 0:
        g = min(num_heads, 128 // head_dim)
        while num_heads % g:
            g -= 1
        return g
    return 1


def _vmem_limit_bytes():
    """Generation-aware VMEM budget (~3/4 of physical; 96 MiB v5e/v6e, 48 MiB v7x)."""
    try:
        cap = getattr(pltpu.get_tpu_info(), "vmem_capacity_bytes", None)
        if cap:
            return int(cap) * 3 // 4
    except Exception:
        pass
    return 64 * 1024 * 1024


def _fit_blocks(block_q, block_kv, embed_dim, out_itemsize, limit):
    """Shrink flash-kernel tiles until estimated VMEM use fits the budget."""
    E = embed_dim

    def usage(bq, bkv):
        weights = E * E * 2 + E * 4                  # wo (single-buffered) + bo
        q_io = 2 * bq * E * 2                        # double-buffered Q tile
        kv_io = 2 * 2 * bkv * E * 2                  # double-buffered K & V tiles
        out_io = 2 * bq * E * out_itemsize
        scratch = 3 * bq * E * 4                     # m, l, acc (f32)
        return weights + q_io + kv_io + out_io + scratch

    # Halving an even (multiple-of-16) divisor of S keeps S-divisibility and
    # the multiple-of-8 sublane alignment.
    while usage(block_q, block_kv) > 0.8 * limit:
        if block_kv >= block_q and block_kv > 128 and block_kv % 16 == 0:
            block_kv //= 2
        elif block_q > 128 and block_q % 16 == 0:
            block_q //= 2
        else:
            break
    return block_q, block_kv


# -----------------------------------------------------------------------------
# Public entry point.
# -----------------------------------------------------------------------------
def multi_head_attention(hidden_states, params, *, num_heads,
                         block_q=256, block_kv=256, block_rows=256,
                         compute_dtype=jnp.bfloat16):
    """hidden_states: [B, S, E].  Returns (attention_output, None)."""
    B, S, E = hidden_states.shape
    assert E % num_heads == 0
    head_dim = E // num_heads
    scale = 1.0 / math.sqrt(head_dim)
    out_dtype = hidden_states.dtype
    out_itemsize = jnp.dtype(out_dtype).itemsize

    # Tile sizes: largest 8-aligned divisors of S not exceeding the targets,
    # then shrink to the per-generation VMEM budget.
    block_q = _pick_block(S, block_q)
    block_kv = _pick_block(S, block_kv)
    block_rows = _pick_block(S, block_rows)
    vmem_limit = _vmem_limit_bytes()
    block_q, block_kv = _fit_blocks(block_q, block_kv, E, out_itemsize, vmem_limit)

    # Megacore (v7x has 2 TCs): keep >= 2 steps on the parallel grid axes.
    if B * (S // block_q) < 2 and block_q >= 256 and block_q % 16 == 0:
        block_q //= 2

    group_heads = _pick_group_heads(num_heads, head_dim, E)

    wq, bq = params['query']
    wk, bk = params['key']
    wv, bv = params['value']
    wo, bo = params['out']

    # Wrapper-side weight prep: [out,in] -> [in,out] (kernel does x @ w), fold
    # 1/sqrt(Dh) into the Q projection, fuse Q/K/V weights into one [E, 3E]
    # matrix, cast matmul operands to bf16 (biases stay f32).
    w_qkv = jnp.concatenate([wq.T * scale, wk.T, wv.T], axis=1).astype(compute_dtype)
    b_qkv = jnp.concatenate([bq * scale, bk, bv]).reshape(1, 3 * E).astype(jnp.float32)
    wo_t = wo.T.astype(compute_dtype)
    bo2 = bo.reshape(1, E).astype(jnp.float32)

    x = hidden_states.astype(compute_dtype)

    def _run(single_buffer_weights):
        # Constant weight/bias blocks: single-buffer them (index_map is constant,
        # double buffering only wastes VMEM — mandatory headroom on v7x).
        const_kw = ({'pipeline_mode': pl.Buffered(buffer_count=1)}
                    if single_buffer_weights else {})

        # ------------------------- pass 1: QKV projection -------------------
        proj_cost = pl.CostEstimate(
            flops=2 * B * S * E * 3 * E,
            transcendentals=0,
            bytes_accessed=(B * S * E * 2 + E * 3 * E * 2 + 3 * E * 4
                            + 3 * B * S * E * 2))
        q_proj, k_proj, v_proj = pl.pallas_call(
            _qkv_proj_kernel,
            out_shape=tuple(jax.ShapeDtypeStruct((B, S, E), compute_dtype)
                            for _ in range(3)),
            grid_spec=pltpu.PrefetchScalarGridSpec(
                num_scalar_prefetch=0,
                grid=(B, S // block_rows),
                in_specs=[
                    pl.BlockSpec((None, block_rows, E), lambda b, r: (b, r, 0)),
                    pl.BlockSpec((E, 3 * E), lambda b, r: (0, 0), **const_kw),
                    pl.BlockSpec((1, 3 * E), lambda b, r: (0, 0), **const_kw),
                ],
                out_specs=tuple(
                    pl.BlockSpec((None, block_rows, E), lambda b, r: (b, r, 0))
                    for _ in range(3)),
            ),
            compiler_params=pltpu.CompilerParams(
                dimension_semantics=("parallel", "parallel"),
                vmem_limit_bytes=vmem_limit),
            cost_estimate=proj_cost,
        )(x, w_qkv, b_qkv)

        # ------------------- pass 2: flash attention + out proj -------------
        kernel = functools.partial(_mha_flash_kernel, num_heads=num_heads,
                                   head_dim=head_dim, group_heads=group_heads)
        flash_cost = pl.CostEstimate(
            flops=4 * B * S * S * E + 2 * B * S * E * E,
            transcendentals=B * num_heads * S * S,
            bytes_accessed=(3 * B * S * E * 2 + E * E * 2 + E * 4
                            + B * S * E * out_itemsize))
        out = pl.pallas_call(
            kernel,
            out_shape=jax.ShapeDtypeStruct((B, S, E), out_dtype),
            grid_spec=pltpu.PrefetchScalarGridSpec(
                num_scalar_prefetch=0,
                grid=(B, S // block_q, S // block_kv),
                in_specs=[
                    pl.BlockSpec((None, block_q, E),
                                 lambda b, qi, ki: (b, qi, 0)),    # Q rows
                    pl.BlockSpec((None, block_kv, E),
                                 lambda b, qi, ki: (b, ki, 0)),    # K rows
                    pl.BlockSpec((None, block_kv, E),
                                 lambda b, qi, ki: (b, ki, 0)),    # V rows
                    pl.BlockSpec((E, E), lambda b, qi, ki: (0, 0), **const_kw),
                    pl.BlockSpec((1, E), lambda b, qi, ki: (0, 0), **const_kw),
                ],
                out_specs=pl.BlockSpec((None, block_q, E),
                                       lambda b, qi, ki: (b, qi, 0)),
                scratch_shapes=[
                    pltpu.VMEM((block_q, E), jnp.float32),   # running max (bcast/head)
                    pltpu.VMEM((block_q, E), jnp.float32),   # running denom (bcast/head)
                    pltpu.VMEM((block_q, E), jnp.float32),   # context accumulator
                ],
            ),
            compiler_params=pltpu.CompilerParams(
                dimension_semantics=("parallel", "parallel", "arbitrary"),
                vmem_limit_bytes=vmem_limit),
            cost_estimate=flash_cost,
        )(q_proj, k_proj, v_proj, wo_t, bo2)
        return out

    try:
        out = _run(single_buffer_weights=True)
    except Exception:
        # Installed JAX rejected pipeline_mode=pl.Buffered(1); fall back to the
        # default double-buffered weight blocks (correctness unchanged).
        out = _run(single_buffer_weights=False)

    return out, None   # vis=False -> attention weights are None


# -----------------------------------------------------------------------------
# Reference / test harness.
# -----------------------------------------------------------------------------
def _init_linear(key, in_features, out_features):
    # Deterministic init mimicking nn.Linear (uniform in +-1/sqrt(fan_in)).
    kw, kb = jax.random.split(key)
    bound = 1.0 / math.sqrt(in_features)
    w = jax.random.uniform(kw, (out_features, in_features), jnp.float32,
                           minval=-bound, maxval=bound)
    b = jax.random.uniform(kb, (out_features,), jnp.float32,
                           minval=-bound, maxval=bound)
    return w, b


def _reference(hidden_states, params, num_heads):
    B, S, E = hidden_states.shape
    Dh = E // num_heads
    wq, bq = params['query']
    wk, bk = params['key']
    wv, bv = params['value']
    wo, bo = params['out']
    q = hidden_states @ wq.T + bq
    k = hidden_states @ wk.T + bk
    v = hidden_states @ wv.T + bv

    def split(t):
        return t.reshape(B, S, num_heads, Dh).transpose(0, 2, 1, 3)

    qh, kh, vh = split(q), split(k), split(v)
    scores = jnp.einsum('bhqd,bhkd->bhqk', qh, kh) / math.sqrt(Dh)
    probs = jax.nn.softmax(scores, axis=-1)
    ctx = jnp.einsum('bhqk,bhkd->bhqd', probs, vh)
    ctx = ctx.transpose(0, 2, 1, 3).reshape(B, S, E)
    return ctx @ wo.T + bo


if __name__ == "__main__":
    B, S, E, H = 2, 8, 32, 4
    key = jax.random.PRNGKey(0)
    kx, kq, kk, kv, ko = jax.random.split(key, 5)

    hidden_states = jax.random.normal(kx, (B, S, E), jnp.float32)
    params = {
        'query': _init_linear(kq, E, E),
        'key':   _init_linear(kk, E, E),
        'value': _init_linear(kv, E, E),
        'out':   _init_linear(ko, E, E),
    }

    out, weights = multi_head_attention(hidden_states, params, num_heads=H)
    out = jax.block_until_ready(out)

    ref = _reference(hidden_states, params, H)
    assert out.shape == ref.shape
    # bf16 matmul operands (f32 accumulation) -> relaxed tolerance vs f32 ref.
    assert jnp.allclose(out, ref, atol=3e-2, rtol=3e-2), "mismatch vs reference"
    assert weights is None

    print("KERNEL_OK")
</pallas_src>

<mosaic_0001>
module attributes {stable_mosaic.version = 11 : i64} {
  func.func @_qkv_proj_kernel(%arg0: i32, %arg1: i32, %arg2: memref<1x8x32xbf16, #tpu.memory_space<vmem>>, %arg3: memref<32x96xbf16, #tpu.memory_space<vmem>>, %arg4: memref<1x96xf32, #tpu.memory_space<vmem>>, %arg5: memref<1x8x32xbf16, #tpu.memory_space<vmem>>, %arg6: memref<1x8x32xbf16, #tpu.memory_space<vmem>>, %arg7: memref<1x8x32xbf16, #tpu.memory_space<vmem>>) attributes {dimension_semantics = [#tpu.dimension_semantics<parallel>, #tpu.dimension_semantics<parallel>], iteration_bounds = array<i64: 2, 1>, scalar_prefetch = 0 : i64, scratch_operands = 0 : i64, tpu.core_type = #tpu.core_type<tc>, window_params = [{transform_indices = @transform_0, window_bounds = array<i64: 1, 8, 32>}, {pipeline_mode = #tpu.pipeline_mode<synchronous>, transform_indices = @transform_1, window_bounds = array<i64: 32, 96>}, {pipeline_mode = #tpu.pipeline_mode<synchronous>, transform_indices = @transform_2, window_bounds = array<i64: 1, 96>}, {transform_indices = @transform_3, window_bounds = array<i64: 1, 8, 32>}, {transform_indices = @transform_4, window_bounds = array<i64: 1, 8, 32>}, {transform_indices = @transform_5, window_bounds = array<i64: 1, 8, 32>}]} {
    %c0 = arith.constant 0 : index
    %c0_0 = arith.constant 0 : index
    %c0_1 = arith.constant 0 : index
    %0 = vector.load %arg2[%c0, %c0_0, %c0_1] : memref<1x8x32xbf16, #tpu.memory_space<vmem>>, vector<1x8x32xbf16>
    %1 = vector.shape_cast %0 : vector<1x8x32xbf16> to vector<8x32xbf16>
    %c0_2 = arith.constant 0 : index
    %c0_3 = arith.constant 0 : index
    %2 = vector.load %arg3[%c0_2, %c0_3] : memref<32x96xbf16, #tpu.memory_space<vmem>>, vector<32x96xbf16>
    %cst = arith.constant dense<0.000000e+00> : vector<8x96xf32>
    %3 = tpu.matmul %1, %2, %cst {dimension_numbers = #tpu.dot_dimension_numbers<[1], [0], [0], [1], [0, 0, 1, 1], [], []>} : vector<8x32xbf16>, vector<32x96xbf16>, vector<8x96xf32> -> vector<8x96xf32>
    %c0_4 = arith.constant 0 : index
    %c0_5 = arith.constant 0 : index
    %4 = vector.load %arg4[%c0_4, %c0_5] : memref<1x96xf32, #tpu.memory_space<vmem>>, vector<1x96xf32>
    %5 = vector.broadcast %4 : vector<1x96xf32> to vector<8x96xf32>
    %6 = arith.addf %3, %5 : vector<8x96xf32>
    %7 = vector.extract_strided_slice %6 {offsets = [0, 0], sizes = [8, 32], strides = [1, 1]} : vector<8x96xf32> to vector<8x32xf32>
    %8 = arith.truncf %7 : vector<8x32xf32> to vector<8x32xbf16>
    %c0_6 = arith.constant 0 : index
    %c0_7 = arith.constant 0 : index
    %c0_8 = arith.constant 0 : index
    %9 = vector.load %arg5[%c0_6, %c0_7, %c0_8] : memref<1x8x32xbf16, #tpu.memory_space<vmem>>, vector<1x8x32xbf16>
    %10 = vector.shape_cast %9 : vector<1x8x32xbf16> to vector<8x32xbf16>
    %11 = vector.shape_cast %8 : vector<8x32xbf16> to vector<1x8x32xbf16>
    tpu.vector_store %arg5[%c0_6, %c0_7, %c0_8], %11 {strides = array<i32>} : memref<1x8x32xbf16, #tpu.memory_space<vmem>>, vector<1x8x32xbf16>,
    %12 = vector.extract_strided_slice %6 {offsets = [0, 32], sizes = [8, 32], strides = [1, 1]} : vector<8x96xf32> to vector<8x32xf32>
    %13 = arith.truncf %12 : vector<8x32xf32> to vector<8x32xbf16>
    %c0_9 = arith.constant 0 : index
    %c0_10 = arith.constant 0 : index
    %c0_11 = arith.constant 0 : index
    %14 = vector.load %arg6[%c0_9, %c0_10, %c0_11] : memref<1x8x32xbf16, #tpu.memory_space<vmem>>, vector<1x8x32xbf16>
    %15 = vector.shape_cast %14 : vector<1x8x32xbf16> to vector<8x32xbf16>
    %16 = vector.shape_cast %13 : vector<8x32xbf16> to vector<1x8x32xbf16>
    tpu.vector_store %arg6[%c0_9, %c0_10, %c0_11], %16 {strides = array<i32>} : memref<1x8x32xbf16, #tpu.memory_space<vmem>>, vector<1x8x32xbf16>,
    %17 = vector.extract_strided_slice %6 {offsets = [0, 64], sizes = [8, 32], strides = [1, 1]} : vector<8x96xf32> to vector<8x32xf32>
    %18 = arith.truncf %17 : vector<8x32xf32> to vector<8x32xbf16>
    %c0_12 = arith.constant 0 : index
    %c0_13 = arith.constant 0 : index
    %c0_14 = arith.constant 0 : index
    %19 = vector.load %arg7[%c0_12, %c0_13, %c0_14] : memref<1x8x32xbf16, #tpu.memory_space<vmem>>, vector<1x8x32xbf16>
    %20 = vector.shape_cast %19 : vector<1x8x32xbf16> to vector<8x32xbf16>
    %21 = vector.shape_cast %18 : vector<8x32xbf16> to vector<1x8x32xbf16>
    tpu.vector_store %arg7[%c0_12, %c0_13, %c0_14], %21 {strides = array<i32>} : memref<1x8x32xbf16, #tpu.memory_space<vmem>>, vector<1x8x32xbf16>,
    return
  }
  func.func @transform_0(%arg0: i32, %arg1: i32) -> (i32, i32, i32) {
    %c0_i32 = arith.constant 0 : i32
    %c0_i32_0 = arith.constant 0 : i32
    return %arg0, %arg1, %c0_i32 : i32, i32, i32
  }
  func.func @transform_1(%arg0: i32, %arg1: i32) -> (i32, i32) {
    %c0_i32 = arith.constant 0 : i32
    %c0_i32_0 = arith.constant 0 : i32
    %c0_i32_1 = arith.constant 0 : i32
    return %c0_i32, %c0_i32_0 : i32, i32
  }
  func.func @transform_2(%arg0: i32, %arg1: i32) -> (i32, i32) {
    %c0_i32 = arith.constant 0 : i32
    %c0_i32_0 = arith.constant 0 : i32
    %c0_i32_1 = arith.constant 0 : i32
    return %c0_i32, %c0_i32_0 : i32, i32
  }
  func.func @transform_3(%arg0: i32, %arg1: i32) -> (i32, i32, i32) {
    %c0_i32 = arith.constant 0 : i32
    %c0_i32_0 = arith.constant 0 : i32
    return %arg0, %arg1, %c0_i32 : i32, i32, i32
  }
  func.func @transform_4(%arg0: i32, %arg1: i32) -> (i32, i32, i32) {
    %c0_i32 = arith.constant 0 : i32
    %c0_i32_0 = arith.constant 0 : i32
    return %arg0, %arg1, %c0_i32 : i32, i32, i32
  }
  func.func @transform_5(%arg0: i32, %arg1: i32) -> (i32, i32, i32) {
    %c0_i32 = arith.constant 0 : i32
    %c0_i32_0 = arith.constant 0 : i32
    return %arg0, %arg1, %c0_i32 : i32, i32, i32
  }
}

module attributes {stable_mosaic.version = 11 : i64} {
  func.func @_qkv_proj_kernel(%arg0: i32, %arg1: i32, %arg2: memref<1x8x32xbf16, #tpu.memory_space<vmem>>, %arg3: memref<32x96xbf16, #tpu.memory_space<vmem>>, %arg4: memref<1x96xf32, #tpu.memory_space<vmem>>, %arg5: memref<1x8x32xbf16, #tpu.memory_space<vmem>>, %arg6: memref<1x8x32xbf16, #tpu.memory_space<vmem>>, %arg7: memref<1x8x32xbf16, #tpu.memory_space<vmem>>) attributes {dimension_semantics = [#tpu.dimension_semantics<parallel>, #tpu.dimension_semantics<parallel>], iteration_bounds = array<i64: 2, 1>, scalar_prefetch = 0 : i64, scratch_operands = 0 : i64, tpu.core_type = #tpu.core_type<tc>, window_params = [{transform_indices = @transform_0, window_bounds = array<i64: 1, 8, 32>}, {pipeline_mode = #tpu.pipeline_mode<synchronous>, transform_indices = @transform_1, window_bounds = array<i64: 32, 96>}, {pipeline_mode = #tpu.pipeline_mode<synchronous>, transform_indices = @transform_2, window_bounds = array<i64: 1, 96>}, {transform_indices = @transform_3, window_bounds = array<i64: 1, 8, 32>}, {transform_indices = @transform_4, window_bounds = array<i64: 1, 8, 32>}, {transform_indices = @transform_5, window_bounds = array<i64: 1, 8, 32>}]} {
    %c0 = arith.constant 0 : index
    %c0_0 = arith.constant 0 : index
    %c0_1 = arith.constant 0 : index
    %0 = vector.load %arg2[%c0, %c0_0, %c0_1] : memref<1x8x32xbf16, #tpu.memory_space<vmem>>, vector<1x8x32xbf16>
    %1 = vector.shape_cast %0 : vector<1x8x32xbf16> to vector<8x32xbf16>
    %c0_2 = arith.constant 0 : index
    %c0_3 = arith.constant 0 : index
    %2 = vector.load %arg3[%c0_2, %c0_3] : memref<32x96xbf16, #tpu.memory_space<vmem>>, vector<32x96xbf16>
    %cst = arith.constant dense<0.000000e+00> : vector<8x96xf32>
    %3 = tpu.matmul %1, %2, %cst {dimension_numbers = #tpu.dot_dimension_numbers<[1], [0], [0], [1], [0, 0, 1, 1], [], []>} : vector<8x32xbf16>, vector<32x96xbf16>, vector<8x96xf32> -> vector<8x96xf32>
    %c0_4 = arith.constant 0 : index
    %c0_5 = arith.constant 0 : index
    %4 = vector.load %arg4[%c0_4, %c0_5] : memref<1x96xf32, #tpu.memory_space<vmem>>, vector<1x96xf32>
    %5 = vector.broadcast %4 : vector<1x96xf32> to vector<8x96xf32>
    %6 = arith.addf %3, %5 : vector<8x96xf32>
    %7 = vector.extract_strided_slice %6 {offsets = [0, 0], sizes = [8, 32], strides = [1, 1]} : vector<8x96xf32> to vector<8x32xf32>
    %8 = arith.truncf %7 : vector<8x32xf32> to vector<8x32xbf16>
    %c0_6 = arith.constant 0 : index
    %c0_7 = arith.constant 0 : index
    %c0_8 = arith.constant 0 : index
    %9 = vector.load %arg5[%c0_6, %c0_7, %c0_8] : memref<1x8x32xbf16, #tpu.memory_space<vmem>>, vector<1x8x32xbf16>
    %10 = vector.shape_cast %9 : vector<1x8x32xbf16> to vector<8x32xbf16>
    %11 = vector.shape_cast %8 : vector<8x32xbf16> to vector<1x8x32xbf16>
    tpu.vector_store %arg5[%c0_6, %c0_7, %c0_8], %11 {strides = array<i32>} : memref<1x8x32xbf16, #tpu.memory_space<vmem>>, vector<1x8x32xbf16>,
    %12 = vector.extract_strided_slice %6 {offsets = [0, 32], sizes = [8, 32], strides = [1, 1]} : vector<8x96xf32> to vector<8x32xf32>
    %13 = arith.truncf %12 : vector<8x32xf32> to vector<8x32xbf16>
    %c0_9 = arith.constant 0 : index
    %c0_10 = arith.constant 0 : index
    %c0_11 = arith.constant 0 : index
    %14 = vector.load %arg6[%c0_9, %c0_10, %c0_11] : memref<1x8x32xbf16, #tpu.memory_space<vmem>>, vector<1x8x32xbf16>
    %15 = vector.shape_cast %14 : vector<1x8x32xbf16> to vector<8x32xbf16>
    %16 = vector.shape_cast %13 : vector<8x32xbf16> to vector<1x8x32xbf16>
    tpu.vector_store %arg6[%c0_9, %c0_10, %c0_11], %16 {strides = array<i32>} : memref<1x8x32xbf16, #tpu.memory_space<vmem>>, vector<1x8x32xbf16>,
    %17 = vector.extract_strided_slice %6 {offsets = [0, 64], sizes = [8, 32], strides = [1, 1]} : vector<8x96xf32> to vector<8x32xf32>
    %18 = arith.truncf %17 : vector<8x32xf32> to vector<8x32xbf16>
    %c0_12 = arith.constant 0 : index
    %c0_13 = arith.constant 0 : index
    %c0_14 = arith.constant 0 : index
    %19 = vector.load %arg7[%c0_12, %c0_13, %c0_14] : memref<1x8x32xbf16, #tpu.memory_space<vmem>>, vector<1x8x32xbf16>
    %20 = vector.shape_cast %19 : vector<1x8x32xbf16> to vector<8x32xbf16>
    %21 = vector.shape_cast %18 : vector<8x32xbf16> to vector<1x8x32xbf16>
    tpu.vector_store %arg7[%c0_12, %c0_13, %c0_14], %21 {strides = array<i32>} : memref<1x8x32xbf16, #tpu.memory_space<vmem>>, vector<1x8x32xbf16>,
    return
  }
  func.func @transform_0(%arg0: i32, %arg1: i32) -> (i32, i32, i32) {
    %c0_i32 = arith.constant 0 : i32
    %c0_i32_0 = arith.constant 0 : i32
    return %arg0, %arg1, %c0_i32 : i32, i32, i32
  }
  func.func @transform_1(%arg0: i32, %arg1: i32) -> (i32, i32) {
    %c0_i32 = arith.constant 0 : i32
    %c0_i32_0 = arith.constant 0 : i32
    %c0_i32_1 = arith.constant 0 : i32
    return %c0_i32, %c0_i32_0 : i32, i32
  }
  func.func @transform_2(%arg0: i32, %arg1: i32) -> (i32, i32) {
    %c0_i32 = arith.constant 0 : i32
    %c0_i32_0 = arith.constant 0 : i32
    %c0_i32_1 = arith.constant 0 : i32
    return %c0_i32, %c0_i32_0 : i32, i32
  }
  func.func @transform_3(%arg0: i32, %arg1: i32) -> (i32, i32, i32) {
    %c0_i32 = arith.constant 0 : i32
    %c0_i32_0 = arith.constant 0 : i32
    return %arg0, %arg1, %c0_i32 : i32, i32, i32
  }
  func.func @transform_4(%arg0: i32, %arg1: i32) -> (i32, i32, i32) {
    %c0_i32 = arith.constant 0 : i32
    %c0_i32_0 = arith.constant 0 : i32
    return %arg0, %arg1, %c0_i32 : i32, i32, i32
  }
  func.func @transform_5(%arg0: i32, %arg1: i32) -> (i32, i32, i32) {
    %c0_i32 = arith.constant 0 : i32
    %c0_i32_0 = arith.constant 0 : i32
    return %arg0, %arg1, %c0_i32 : i32, i32, i32
  }
}

</mosaic_0001>

<llo_original>
// kernel: tpu_custom_call.1
$region0: #{tpu_custom_call.1}
  #allocation0 [shape = 'u32[]', space=smem, size = 0x4, offset = 0x4, fixed_abs, tag = 'smem constant byte address 0x4 - core index']
  #allocation1 [shape = 'u32[72,128]{1,0:T(1,128)}', space=vmem, size = 0x9000, scoped, tag = 'internal scratch']
  %s0 = inlined_call_operand.hbm [shape: bf16[2,8,32], index: 0, kind: input, shape index: {}]
  %s1 = inlined_call_operand.hbm [shape: bf16[32,96], index: 1, kind: input, shape index: {}]
  %s2 = inlined_call_operand.vmem [shape: f32[1,96], index: 2, kind: input, shape index: {}]
  %s3 = inlined_call_operand.hbm [shape: bf16[2,8,32], index: 3, kind: output, shape index: {0}]
  %s4 = inlined_call_operand.hbm [shape: bf16[2,8,32], index: 4, kind: output, shape index: {1}]
  %s5 = inlined_call_operand.hbm [shape: bf16[2,8,32], index: 5, kind: output, shape index: {2}]
  %6 = xla_tuple %s3, %s4, %s5
  %s7 = sld [smem:[#allocation0]]
  $region69: #{tpu_custom_call.1} parent=0
    _
  %s9 = ssub.s32 1, %s7
  %s10 = scalar_select 0, %s9, %s7
  $region1: #{tpu_custom_call.1} parent=0
    #allocation2 [shape = 'u8[4096]{0}', space=vmem, size = 0x1000, scoped, tag = 'input window, operand 0']
    #allocation3 [shape = 's32[2]{0}', space=sflag, size = 0x8, scoped, tag = 'scoped memory for tpu_custom_call.1']
    #allocation4 [shape = 's32[2]{0}', space=sflag, size = 0x8, scoped, tag = 'scoped memory for tpu_custom_call.1']
    #allocation5 [shape = 'u8[8192]{0}', space=vmem, size = 0x2000, scoped, tag = 'input window, operand 1, single buffered']
    #allocation6 [shape = 's32[1]{0}', space=sflag, size = 0x4, scoped, tag = 'scoped memory for tpu_custom_call.1']
    #allocation7 [shape = 'u8[4096]{0}', space=vmem, size = 0x1000, scoped, tag = 'output window, operand 0']
    #allocation8 [shape = 'u8[4096]{0}', space=vmem, size = 0x1000, scoped, tag = 'output window, operand 1']
    #allocation9 [shape = 's32[2]{0}', space=sflag, size = 0x8, scoped, tag = 'scoped memory for tpu_custom_call.1']
    #allocation10 [shape = 'u8[4096]{0}', space=vmem, size = 0x1000, scoped, tag = 'output window, operand 2']
    %11 = vsyncpa [#allocation3], 0
    %s12 = scalar_lea.sflag [#allocation3], 1
    %13 = vsyncpa %s12, 0
    %14 = vsyncpa [#allocation6], 0
    %15 = vsyncpa [#allocation4], 0
    %s16 = scalar_lea.sflag [#allocation4], 1
    %17 = vsyncpa %s16, 0
    %18 = vsyncpa [#allocation9], 0
    %s19 = scalar_lea.sflag [#allocation9], 1
    %20 = vsyncpa %s19, 0
    loop: start=0, step=1, limit=4
    $region2: #{tpu_custom_call.1} parent=1 // loop_pre_header
      _
    $region3: #{tpu_custom_call.1} parent=1 // loop_header
      %s22 = sphi 0, %s26
      %p23 = scmp.ge.s32.totalorder %s22, 4
      %s29 = sphi 0, %s41
      %s30 = sphi 0, %s37
      %s31 = sphi 0, %s29
      %s32 = sphi 0, %s30
      %s33 = sphi 0, %s31
      %s34 = sphi 0, %s32
      %s46 = sphi 0, %s48
      %s49 = sphi 0, %s46
      %s50 = sphi 0, %s49
      %s66 = sphi 0, %s50
      %s70 = sphi 0, %s70
      %s72 = sphi 0, %s70
      %s73 = sphi 0, %s72
      %s87 = sphi 0, %s73
      %s91 = sphi 0, %s91
      %s93 = sphi 0, %s91
      %s94 = sphi 0, %s93
      %s108 = sphi 0, %s94
      %s116 = sphi 0, %s118
      %s119 = sphi 0, %s116
      %s120 = sphi 0, %s119
      %s136 = sphi 0, %s120
      %s144 = sphi 0, %s146
      %s147 = sphi 0, %s144
      %s148 = sphi 0, %s147
      %s164 = sphi 0, %s148
      %s172 = sphi 0, %s174
      %s175 = sphi 0, %s172
      %s176 = sphi 0, %s175
      %s192 = sphi 0, %s176
    $region4: #{tpu_custom_call.1} parent=1 // loop_header_branch
      %25 = sbr.rel (%p23) target = $region8
    $region5: #{tpu_custom_call.1} parent=1 // loop_body
      %s27 = ssub.s32 %s22, 1
      %s28 = ssub.s32 %s22, 2
      %s35 = sadd.s32 1, %s30
      %p36 = scmp.ge.s32.totalorder %s35, 1
      %s37 = scalar_select %p36, 0, %s35
      %s38 = sadd.s32 1, %s29
      %s39 = scalar_select %p36, %s38, %s29
      %p40 = scmp.ge.s32.totalorder %s39, 2
      %s41 = scalar_select %p40, 0, %s39
      %s42 = ssub.s32 %s29, %s41
      %s43 = ssub.s32 %s30, %s37
      %s44 = sor.u32 %s42, %s43
      %p45 = scmp.eq.s32.totalorder %s44, 0
      %s47 = sadd.s32 %s46, 1
      %s48 = scalar_select %p45, %s46, %s47
      %p51 = pneg %p45
      %p52 = scmp.eq.s32.totalorder %s22, 1
      %p53 = por %p51, %p52
      %p54 = scmp.ne.s32.totalorder %s46, %s49
      %p55 = scmp.eq.s32.totalorder %s22, 0
      %p56 = por %p54, %p55
      %p57 = scmp.ne.s32.totalorder %s46, %s49
      %p58 = scmp.eq.s32.totalorder %s27, 1
      %p59 = por %p57, %p58
      %p60 = scmp.ne.s32.totalorder %s49, %s50
      %p61 = scmp.eq.s32.totalorder %s27, 0
      %p62 = por %p60, %p61
      %p63 = scmp.ne.s32.totalorder %s49, %s50
      %p64 = scmp.eq.s32.totalorder %s28, 1
      %p65 = por %p63, %p64
      %p67 = scmp.ne.s32.totalorder %s50, %s66
      %p68 = scmp.eq.s32.totalorder %s28, 0
      %p69 = por %p67, %p68
      %s71 = sadd.s32 %s70, 1
      %p74 = scmp.eq.s32.totalorder %s22, 1
      %p75 = scmp.ne.s32.totalorder %s70, %s72
      %p76 = scmp.eq.s32.totalorder %s22, 0
      %p77 = por %p75, %p76
      %p78 = scmp.ne.s32.totalorder %s70, %s72
      %p79 = scmp.eq.s32.totalorder %s27, 1
      %p80 = por %p78, %p79
      %p81 = scmp.ne.s32.totalorder %s72, %s73
      %p82 = scmp.eq.s32.totalorder %s27, 0
      %p83 = por %p81, %p82
      %p84 = scmp.ne.s32.totalorder %s72, %s73
      %p85 = scmp.eq.s32.totalorder %s28, 1
      %p86 = por %p84, %p85
      %p88 = scmp.ne.s32.totalorder %s73, %s87
      %p89 = scmp.eq.s32.totalorder %s28, 0
      %p90 = por %p88, %p89
      %s92 = sadd.s32 %s91, 1
      %p95 = scmp.eq.s32.totalorder %s22, 1
      %p96 = scmp.ne.s32.totalorder %s91, %s93
      %p97 = scmp.eq.s32.totalorder %s22, 0
      %p98 = por %p96, %p97
      %p99 = scmp.ne.s32.totalorder %s91, %s93
      %p100 = scmp.eq.s32.totalorder %s27, 1
      %p101 = por %p99, %p100
      %p102 = scmp.ne.s32.totalorder %s93, %s94
      %p103 = scmp.eq.s32.totalorder %s27, 0
      %p104 = por %p102, %p103
      %p105 = scmp.ne.s32.totalorder %s93, %s94
      %p106 = scmp.eq.s32.totalorder %s28, 1
      %p107 = por %p105, %p106
      %p109 = scmp.ne.s32.totalorder %s94, %s108
      %p110 = scmp.eq.s32.totalorder %s28, 0
      %p111 = por %p109, %p110
      %s112 = ssub.s32 %s29, %s41
      %s113 = ssub.s32 %s30, %s37
      %s114 = sor.u32 %s112, %s113
      %p115 = scmp.eq.s32.totalorder %s114, 0
      %s117 = sadd.s32 %s116, 1
      %s118 = scalar_select %p115, %s116, %s117
      %p121 = pneg %p115
      %p122 = scmp.eq.s32.totalorder %s22, 1
      %p123 = por %p121, %p122
      %p124 = scmp.ne.s32.totalorder %s116, %s119
      %p125 = scmp.eq.s32.totalorder %s22, 0
      %p126 = por %p124, %p125
      %p127 = scmp.ne.s32.totalorder %s116, %s119
      %p128 = scmp.eq.s32.totalorder %s27, 1
      %p129 = por %p127, %p128
      %p130 = scmp.ne.s32.totalorder %s119, %s120
      %p131 = scmp.eq.s32.totalorder %s27, 0
      %p132 = por %p130, %p131
      %p133 = scmp.ne.s32.totalorder %s119, %s120
      %p134 = scmp.eq.s32.totalorder %s28, 1
      %p135 = por %p133, %p134
      %p137 = scmp.ne.s32.totalorder %s120, %s136
      %p138 = scmp.eq.s32.totalorder %s28, 0
      %p139 = por %p137, %p138
      %s140 = ssub.s32 %s29, %s41
      %s141 = ssub.s32 %s30, %s37
      %s142 = sor.u32 %s140, %s141
      %p143 = scmp.eq.s32.totalorder %s142, 0
      %s145 = sadd.s32 %s144, 1
      %s146 = scalar_select %p143, %s144, %s145
      %p149 = pneg %p143
      %p150 = scmp.eq.s32.totalorder %s22, 1
      %p151 = por %p149, %p150
      %p152 = scmp.ne.s32.totalorder %s144, %s147
      %p153 = scmp.eq.s32.totalorder %s22, 0
      %p154 = por %p152, %p153
      %p155 = scmp.ne.s32.totalorder %s144, %s147
      %p156 = scmp.eq.s32.totalorder %s27, 1
      %p157 = por %p155, %p156
      %p158 = scmp.ne.s32.totalorder %s147, %s148
      %p159 = scmp.eq.s32.totalorder %s27, 0
      %p160 = por %p158, %p159
      %p161 = scmp.ne.s32.totalorder %s147, %s148
      %p162 = scmp.eq.s32.totalorder %s28, 1
      %p163 = por %p161, %p162
      %p165 = scmp.ne.s32.totalorder %s148, %s164
      %p166 = scmp.eq.s32.totalorder %s28, 0
      %p167 = por %p165, %p166
      %s168 = ssub.s32 %s29, %s41
      %s169 = ssub.s32 %s30, %s37
      %s170 = sor.u32 %s168, %s169
      %p171 = scmp.eq.s32.totalorder %s170, 0
      %s173 = sadd.s32 %s172, 1
      %s174 = scalar_select %p171, %s172, %s173
      %p177 = pneg %p171
      %p178 = scmp.eq.s32.totalorder %s22, 1
      %p179 = por %p177, %p178
      %p180 = scmp.ne.s32.totalorder %s172, %s175
      %p181 = scmp.eq.s32.totalorder %s22, 0
      %p182 = por %p180, %p181
      %p183 = scmp.ne.s32.totalorder %s172, %s175
      %p184 = scmp.eq.s32.totalorder %s27, 1
      %p185 = por %p183, %p184
      %p186 = scmp.ne.s32.totalorder %s175, %s176
      %p187 = scmp.eq.s32.totalorder %s27, 0
      %p188 = por %p186, %p187
      %p189 = scmp.ne.s32.totalorder %s175, %s176
      %p190 = scmp.eq.s32.totalorder %s28, 1
      %p191 = por %p189, %p190
      %p193 = scmp.ne.s32.totalorder %s176, %s192
      %p194 = scmp.eq.s32.totalorder %s28, 0
      %p195 = por %p193, %p194
      %p196 = scmp.le.s32.totalorder 1, %s22
      %p197 = scmp.lt.s32.totalorder %s22, 3
      %p198 = pnand %p196, %p197
      %p199 = pneg %p198
      // Predicated region
      $region9: #{tpu_custom_call.1} parent=5 // pred_check
        _
      $region10: #{tpu_custom_call.1} parent=5 // pred_check_branch
        %201 = sbr.rel (%p198) target = $region12
      $region11: #{tpu_custom_call.1} parent=5 // pred_region
        %s202 = ssub.s32 %s22, 1
        // Predicated region
        $region13: #{tpu_custom_call.1} parent=11 // pred_check
          %p203 = pneg %p83
        $region14: #{tpu_custom_call.1} parent=11 // pred_check_branch
          %205 = sbr.rel (%p203) target = $region16
        $region15: #{tpu_custom_call.1} parent=11 // pred_region
          %207 = vsyncadd [#allocation6], 0
          %s208 = sshll.u32 %s1, 4
          %s209 = int_to_ptr.hbm [resolvable:$true] %s208
          %s210 = sshll.u32 [#allocation5], 4
          %s211 = int_to_ptr.vmem [resolvable:$true] %s210
          %216 = dma.hbm_to_vmem [thread:$0]  %s209, 256, %s211, [#allocation6], 64, 64, 4
        $region16: #{tpu_custom_call.1} parent=11 // pred_fallthru
          _
        // Predicated region
        $region17: #{tpu_custom_call.1} parent=11 // pred_check
          %p217 = pneg %p104
        $region18: #{tpu_custom_call.1} parent=11 // pred_check_branch
          %219 = sbr.rel (%p217) target = $region20
        $region19: #{tpu_custom_call.1} parent=11 // pred_region
          _
        $region20: #{tpu_custom_call.1} parent=11 // pred_fallthru
          _
      $region12: #{tpu_custom_call.1} parent=5 // pred_fallthru
        _
      %p220 = scmp.lt.s32.totalorder %s22, 2
      // Predicated region
      $region21: #{tpu_custom_call.1} parent=5 // pred_check
        %p221 = pneg %p220
      $region22: #{tpu_custom_call.1} parent=5 // pred_check_branch
        %223 = sbr.rel (%p221) target = $region24
      $region23: #{tpu_custom_call.1} parent=5 // pred_region
        // Predicated region
        $region25: #{tpu_custom_call.1} parent=23 // pred_check
          %p224 = pneg %p56
        $region26: #{tpu_custom_call.1} parent=23 // pred_check_branch
          %226 = sbr.rel (%p224) target = $region28
        $region27: #{tpu_custom_call.1} parent=23 // pred_region
          %s227 = sand.u32 %s46, 1
          %s228 = scalar_lea.sflag [#allocation3], %s227
          %s229 = sand.u32 %s46, 1
          %s230 = smul.addr %s229, 4
          %s231 = scalar_lea.vmem [#allocation2], %s230
          %233 = vsyncadd %s228, 0
          %s234 = sadd.s32 %s30, %s29
          %s235 = smul.addr %s234, 4
          %s236 = scalar_lea.hbm %s0, %s235
          %s238 = sshll.u32 %s236, 4
          %s239 = int_to_ptr.hbm [resolvable:$true] %s238
          %s240 = sshll.u32 %s231, 4
          %s241 = int_to_ptr.vmem [resolvable:$true] %s240
          %243 = dma.hbm_to_vmem [thread:$0]  %s239, 64, %s241, %s228
        $region28: #{tpu_custom_call.1} parent=23 // pred_fallthru
          _
      $region24: #{tpu_custom_call.1} parent=5 // pred_fallthru
        _
      %p244 = scmp.le.s32.totalorder 1, %s22
      %p245 = scmp.lt.s32.totalorder %s22, 3
      %p246 = pnand %p244, %p245
      %p247 = pneg %p246
      // Predicated region
      $region29: #{tpu_custom_call.1} parent=5 // pred_check
        _
      $region30: #{tpu_custom_call.1} parent=5 // pred_check_branch
        %249 = sbr.rel (%p246) target = $region32
      $region31: #{tpu_custom_call.1} parent=5 // pred_region
        %s250 = ssub.s32 %s22, 1
        %s251 = sand.u32 %s49, 1
        %s252 = scalar_lea.sflag [#allocation3], %s251
        %s253 = sand.u32 %s49, 1
        %s254 = smul.addr %s253, 4
        %s255 = scalar_lea.vmem [#allocation2], %s254
        // Predicated region
        $region33: #{tpu_custom_call.1} parent=31 // pred_check
          %p256 = pneg %p62
        $region34: #{tpu_custom_call.1} parent=31 // pred_check_branch
          %258 = sbr.rel (%p256) target = $region36
        $region35: #{tpu_custom_call.1} parent=31 // pred_region
          %260 = dma.done %s252, 64
        $region36: #{tpu_custom_call.1} parent=31 // pred_fallthru
          _
        // Predicated region
        $region37: #{tpu_custom_call.1} parent=31 // pred_check
          %p261 = pneg %p83
        $region38: #{tpu_custom_call.1} parent=31 // pred_check_branch
          %263 = sbr.rel (%p261) target = $region40
        $region39: #{tpu_custom_call.1} parent=31 // pred_region
          %265 = dma.done [#allocation6], 256
        $region40: #{tpu_custom_call.1} parent=31 // pred_fallthru
          _
        %s266 = sand.u32 %s49, 1
        %s267 = scalar_lea.sflag [#allocation3], %s266
        %s268 = sand.u32 %s49, 1
        %s269 = smul.addr %s268, 4
        %s270 = scalar_lea.vmem [#allocation2], %s269
        %p271 = pneg %p62
        %p272 = pneg %p59
        %p273 = pneg %p83
        %p274 = pneg %p80
        %p275 = pneg %p104
        %p276 = pneg %p101
        %p277 = pneg %p132
        %p278 = pneg %p129
        %s279 = sand.u32 %s119, 1
        %s280 = scalar_lea.sflag [#allocation4], %s279
        %s281 = sand.u32 %s119, 1
        %s282 = smul.addr %s281, 4
        %s283 = scalar_lea.vmem [#allocation7], %s282
        %p284 = pneg %p160
        %p285 = pneg %p157
        %s286 = sand.u32 %s27, 1
        %s287 = scalar_lea.sflag [#allocation9], %s286
        %s288 = sand.u32 %s147, 1
        %s289 = smul.addr %s288, 4
        %s290 = scalar_lea.vmem [#allocation8], %s289
        %p291 = pneg %p188
        %p292 = pneg %p185
        %s293 = sand.u32 %s27, 1
        %s294 = scalar_lea.sflag [#allocation9], %s293
        %s295 = sand.u32 %s175, 1
        %s296 = smul.addr %s295, 4
        %s297 = scalar_lea.vmem [#allocation10], %s296
        %v299 = vld [vmem:[%s255] sm:$0xf]
        %v300 = vld [vmem:[#allocation5] sm:$0xf]
        %v301 = vld [vmem:[#allocation5 + $0x4] sm:$0xf]
        %v302 = vld [vmem:[#allocation5 + $0x8] sm:$0xf]
        %v303 = vld [vmem:[#allocation5 + $0xc] sm:$0xf]
        %v304 = vld [vmem:[%s2] sm:$0x1]
        %v306 = vperm.slane %v304, 0
        %v312 = vunpack.c.l.b16 %v300
        %v313 = vunpack.c.l.b16 %v301
        %v314 = vunpack.c.l.b16 %v302
        %v315 = vunpack.c.l.b16 %v303
        %v316 = vpack.c.b16 %v313, %v312
        %v317 = vpack.c.b16 %v315, %v314
        %vm320 = vcmask 261120
        %v322 = vsel %vm320, %v299, 0
        %324 = vmatpush.bf16.msra.mxu0 0
        %325 = vmatpush.bf16.msra.mxu0 0
        %326 = vmatpush.bf16.msra.mxu0 0
        %327 = vmatpush.bf16.msra.mxu0 0
        %328 = vmatpush.bf16.msra.mxu0 0
        %329 = vmatpush.bf16.msra.mxu0 0
        %330 = vmatpush.bf16.msra.mxu0 %v317
        %331 = vmatpush.bf16.msra.mxu0 %v316
        %332 = vmatmul.bf16.gmra.mxu0 %v322
        %v333 = vpop.f32.mrf.mxu0
        %v334 = vadd.f32 %v306, %v333
        %v335 = vpop.f32.mrf.mxu0
        %336 = vdwg.mxu0
        %v337 = vpack.c.bf16 %v334, %v334
        %vm338 = vcmask 257024
        %339 = vst.msk [vmem:[%s283] sm:$0xf] %vm338, %v337
        %341 = vrot.lane.b32.xlu0 %v337, 96
        %v342 = vpop.permute.xlu0 %341
        %344 = vst.msk [vmem:[%s290] sm:$0xf] %vm338, %v342
        %345 = vrot.lane.b32.xlu0 %v337, 64
        %v346 = vpop.permute.xlu0 %345
        %348 = vst.msk [vmem:[%s297] sm:$0xf] %vm338, %v346
        %s349 = sand.u32 %s119, 1
        %s350 = scalar_lea.sflag [#allocation4], %s349
        %s351 = sand.u32 %s119, 1
        %s352 = smul.addr %s351, 4
        %s353 = scalar_lea.vmem [#allocation7], %s352
        %s354 = sand.u32 %s27, 1
        %s355 = scalar_lea.sflag [#allocation9], %s354
        %s356 = sand.u32 %s147, 1
        %s357 = smul.addr %s356, 4
        %s358 = scalar_lea.vmem [#allocation8], %s357
        %s359 = sand.u32 %s27, 1
        %s360 = scalar_lea.sflag [#allocation9], %s359
        %s361 = sand.u32 %s175, 1
        %s362 = smul.addr %s361, 4
        %s363 = scalar_lea.vmem [#allocation10], %s362
        // Predicated region
        $region41: #{tpu_custom_call.1} parent=31 // pred_check
          %p364 = pneg %p129
        $region42: #{tpu_custom_call.1} parent=31 // pred_check_branch
          %366 = sbr.rel (%p364) target = $region44
        $region43: #{tpu_custom_call.1} parent=31 // pred_region
          %368 = vsyncadd %s350, 0
          %s369 = sadd.s32 %s32, %s31
          %s370 = smul.addr %s369, 4
          %s371 = scalar_lea.hbm %s3, %s370
          %s373 = sshll.u32 %s353, 4
          %s374 = int_to_ptr.vmem [resolvable:$true] %s373
          %s375 = sshll.u32 %s371, 4
          %s376 = int_to_ptr.hbm [resolvable:$true] %s375
          %378 = dma.vmem_to_hbm [thread:$0]  %s374, 64, %s376, %s350
        $region44: #{tpu_custom_call.1} parent=31 // pred_fallthru
          _
        // Predicated region
        $region45: #{tpu_custom_call.1} parent=31 // pred_check
          %p379 = pneg %p157
        $region46: #{tpu_custom_call.1} parent=31 // pred_check_branch
          %381 = sbr.rel (%p379) target = $region48
        $region47: #{tpu_custom_call.1} parent=31 // pred_region
          %383 = vsyncadd %s355, 0
          %s384 = sadd.s32 %s32, %s31
          %s385 = smul.addr %s384, 4
          %s386 = scalar_lea.hbm %s4, %s385
          %s388 = sshll.u32 %s358, 4
          %s389 = int_to_ptr.vmem [resolvable:$true] %s388
          %s390 = sshll.u32 %s386, 4
          %s391 = int_to_ptr.hbm [resolvable:$true] %s390
          %393 = dma.vmem_to_hbm [thread:$0]  %s389, 64, %s391, %s355
        $region48: #{tpu_custom_call.1} parent=31 // pred_fallthru
          _
        // Predicated region
        $region49: #{tpu_custom_call.1} parent=31 // pred_check
          %p394 = pneg %p185
        $region50: #{tpu_custom_call.1} parent=31 // pred_check_branch
          %396 = sbr.rel (%p394) target = $region52
        $region51: #{tpu_custom_call.1} parent=31 // pred_region
          %398 = vsyncadd %s360, 0
          %s399 = sadd.s32 %s32, %s31
          %s400 = smul.addr %s399, 4
          %s401 = scalar_lea.hbm %s5, %s400
          %s403 = sshll.u32 %s363, 4
          %s404 = int_to_ptr.vmem [resolvable:$true] %s403
          %s405 = sshll.u32 %s401, 4
          %s406 = int_to_ptr.hbm [resolvable:$true] %s405
          %408 = dma.vmem_to_hbm [thread:$0]  %s404, 64, %s406, %s360
        $region52: #{tpu_custom_call.1} parent=31 // pred_fallthru
          _
      $region32: #{tpu_custom_call.1} parent=5 // pred_fallthru
        _
      %p409 = scmp.le.s32.totalorder 2, %s22
      // Predicated region
      $region53: #{tpu_custom_call.1} parent=5 // pred_check
        %p410 = pneg %p409
      $region54: #{tpu_custom_call.1} parent=5 // pred_check_branch
        %412 = sbr.rel (%p410) target = $region56
      $region55: #{tpu_custom_call.1} parent=5 // pred_region
        %s413 = ssub.s32 %s22, 2
        // Predicated region
        $region57: #{tpu_custom_call.1} parent=55 // pred_check
          %p414 = pneg %p135
        $region58: #{tpu_custom_call.1} parent=55 // pred_check_branch
          %416 = sbr.rel (%p414) target = $region60
        $region59: #{tpu_custom_call.1} parent=55 // pred_region
          %s417 = sand.u32 %s120, 1
          %s418 = scalar_lea.sflag [#allocation4], %s417
          %s419 = sand.u32 %s120, 1
          %s420 = smul.addr %s419, 4
          %s421 = scalar_lea.vmem [#allocation7], %s420
          %423 = dma.done %s418, 64
        $region60: #{tpu_custom_call.1} parent=55 // pred_fallthru
          _
        // Predicated region
        $region61: #{tpu_custom_call.1} parent=55 // pred_check
          %p424 = pneg %p163
        $region62: #{tpu_custom_call.1} parent=55 // pred_check_branch
          %426 = sbr.rel (%p424) target = $region64
        $region63: #{tpu_custom_call.1} parent=55 // pred_region
          %s427 = sand.u32 %s28, 1
          %s428 = scalar_lea.sflag [#allocation9], %s427
          %s429 = sand.u32 %s148, 1
          %s430 = smul.addr %s429, 4
          %s431 = scalar_lea.vmem [#allocation8], %s430
          %433 = dma.done %s428, 64
        $region64: #{tpu_custom_call.1} parent=55 // pred_fallthru
          _
        // Predicated region
        $region65: #{tpu_custom_call.1} parent=55 // pred_check
          %p434 = pneg %p191
        $region66: #{tpu_custom_call.1} parent=55 // pred_check_branch
          %436 = sbr.rel (%p434) target = $region68
        $region67: #{tpu_custom_call.1} parent=55 // pred_region
          %s437 = sand.u32 %s28, 1
          %s438 = scalar_lea.sflag [#allocation9], %s437
          %s439 = sand.u32 %s176, 1
          %s440 = smul.addr %s439, 4
          %s441 = scalar_lea.vmem [#allocation10], %s440
          %443 = dma.done %s438, 64
        $region68: #{tpu_custom_call.1} parent=55 // pred_fallthru
          _
      $region56: #{tpu_custom_call.1} parent=5 // pred_fallthru
        _
    $region6: #{tpu_custom_call.1} parent=1 // loop_footer
      %s26 = sadd.s32 1, %s22
    $region7: #{tpu_custom_call.1} parent=1 // loop_footer_branch
      %21 = sbr.rel target = $region3
    $region8: #{tpu_custom_call.1} parent=1 // loop_exit
      _
    %444 = vsyncpa [#allocation3], 1
    %s445 = scalar_lea.sflag [#allocation3], 1
    %446 = vsyncpa %s445, 1
    %447 = vsyncpa [#allocation6], 1
    %448 = vsyncpa [#allocation4], 1
    %s449 = scalar_lea.sflag [#allocation4], 1
    %450 = vsyncpa %s449, 1
    %451 = vsyncpa [#allocation9], 1
    %s452 = scalar_lea.sflag [#allocation9], 1
    %453 = vsyncpa %s452, 1

// kernel: tpu_custom_call.1
$region0: #{tpu_custom_call.1}
  #allocation0 [shape = 'u32[]', space=smem, size = 0x4, offset = 0x4, fixed_abs, tag = 'smem constant byte address 0x4 - core index']
  #allocation1 [shape = 'u32[72,128]{1,0:T(1,128)}', space=vmem, size = 0x9000, scoped, tag = 'internal scratch']
  %s0 = inlined_call_operand.hbm [shape: bf16[2,8,32], index: 0, kind: input, shape index: {}]
  %s1 = inlined_call_operand.hbm [shape: bf16[32,96], index: 1, kind: input, shape index: {}]
  %s2 = inlined_call_operand.vmem [shape: f32[1,96], index: 2, kind: input, shape index: {}]
  %s3 = inlined_call_operand.hbm [shape: bf16[2,8,32], index: 3, kind: output, shape index: {0}]
  %s4 = inlined_call_operand.hbm [shape: bf16[2,8,32], index: 4, kind: output, shape index: {1}]
  %s5 = inlined_call_operand.hbm [shape: bf16[2,8,32], index: 5, kind: output, shape index: {2}]
  %6 = xla_tuple %s3, %s4, %s5
  %s7 = sld [smem:[#allocation0]]
  $region69: #{tpu_custom_call.1} parent=0
    _
  %s9 = ssub.s32 1, %s7
  %s10 = scalar_select 0, %s9, %s7
  $region1: #{tpu_custom_call.1} parent=0
    #allocation2 [shape = 'u8[4096]{0}', space=vmem, size = 0x1000, scoped, tag = 'input window, operand 0']
    #allocation3 [shape = 's32[2]{0}', space=sflag, size = 0x8, scoped, tag = 'scoped memory for tpu_custom_call.1']
    #allocation4 [shape = 's32[2]{0}', space=sflag, size = 0x8, scoped, tag = 'scoped memory for tpu_custom_call.1']
    #allocation5 [shape = 'u8[8192]{0}', space=vmem, size = 0x2000, scoped, tag = 'input window, operand 1, single buffered']
    #allocation6 [shape = 's32[1]{0}', space=sflag, size = 0x4, scoped, tag = 'scoped memory for tpu_custom_call.1']
    #allocation7 [shape = 'u8[4096]{0}', space=vmem, size = 0x1000, scoped, tag = 'output window, operand 0']
    #allocation8 [shape = 'u8[4096]{0}', space=vmem, size = 0x1000, scoped, tag = 'output window, operand 1']
    #allocation9 [shape = 's32[2]{0}', space=sflag, size = 0x8, scoped, tag = 'scoped memory for tpu_custom_call.1']
    #allocation10 [shape = 'u8[4096]{0}', space=vmem, size = 0x1000, scoped, tag = 'output window, operand 2']
    %11 = vsyncpa [#allocation3], 0
    %s12 = scalar_lea.sflag [#allocation3], 1
    %13 = vsyncpa %s12, 0
    %14 = vsyncpa [#allocation6], 0
    %15 = vsyncpa [#allocation4], 0
    %s16 = scalar_lea.sflag [#allocation4], 1
    %17 = vsyncpa %s16, 0
    %18 = vsyncpa [#allocation9], 0
    %s19 = scalar_lea.sflag [#allocation9], 1
    %20 = vsyncpa %s19, 0
    loop: start=0, step=1, limit=4
    $region2: #{tpu_custom_call.1} parent=1 // loop_pre_header
      _
    $region3: #{tpu_custom_call.1} parent=1 // loop_header
      %s22 = sphi 0, %s26
      %p23 = scmp.ge.s32.totalorder %s22, 4
      %s29 = sphi 0, %s41
      %s30 = sphi 0, %s37
      %s31 = sphi 0, %s29
      %s32 = sphi 0, %s30
      %s33 = sphi 0, %s31
      %s34 = sphi 0, %s32
      %s46 = sphi 0, %s48
      %s49 = sphi 0, %s46
      %s50 = sphi 0, %s49
      %s66 = sphi 0, %s50
      %s70 = sphi 0, %s70
      %s72 = sphi 0, %s70
      %s73 = sphi 0, %s72
      %s87 = sphi 0, %s73
      %s91 = sphi 0, %s91
      %s93 = sphi 0, %s91
      %s94 = sphi 0, %s93
      %s108 = sphi 0, %s94
      %s116 = sphi 0, %s118
      %s119 = sphi 0, %s116
      %s120 = sphi 0, %s119
      %s136 = sphi 0, %s120
      %s144 = sphi 0, %s146
      %s147 = sphi 0, %s144
      %s148 = sphi 0, %s147
      %s164 = sphi 0, %s148
      %s172 = sphi 0, %s174
      %s175 = sphi 0, %s172
      %s176 = sphi 0, %s175
      %s192 = sphi 0, %s176
    $region4: #{tpu_custom_call.1} parent=1 // loop_header_branch
      %25 = sbr.rel (%p23) target = $region8
    $region5: #{tpu_custom_call.1} parent=1 // loop_body
      %s27 = ssub.s32 %s22, 1
      %s28 = ssub.s32 %s22, 2
      %s35 = sadd.s32 1, %s30
      %p36 = scmp.ge.s32.totalorder %s35, 1
      %s37 = scalar_select %p36, 0, %s35
      %s38 = sadd.s32 1, %s29
      %s39 = scalar_select %p36, %s38, %s29
      %p40 = scmp.ge.s32.totalorder %s39, 2
      %s41 = scalar_select %p40, 0, %s39
      %s42 = ssub.s32 %s29, %s41
      %s43 = ssub.s32 %s30, %s37
      %s44 = sor.u32 %s42, %s43
      %p45 = scmp.eq.s32.totalorder %s44, 0
      %s47 = sadd.s32 %s46, 1
      %s48 = scalar_select %p45, %s46, %s47
      %p51 = pneg %p45
      %p52 = scmp.eq.s32.totalorder %s22, 1
      %p53 = por %p51, %p52
      %p54 = scmp.ne.s32.totalorder %s46, %s49
      %p55 = scmp.eq.s32.totalorder %s22, 0
      %p56 = por %p54, %p55
      %p57 = scmp.ne.s32.totalorder %s46, %s49
      %p58 = scmp.eq.s32.totalorder %s27, 1
      %p59 = por %p57, %p58
      %p60 = scmp.ne.s32.totalorder %s49, %s50
      %p61 = scmp.eq.s32.totalorder %s27, 0
      %p62 = por %p60, %p61
      %p63 = scmp.ne.s32.totalorder %s49, %s50
      %p64 = scmp.eq.s32.totalorder %s28, 1
      %p65 = por %p63, %p64
      %p67 = scmp.ne.s32.totalorder %s50, %s66
      %p68 = scmp.eq.s32.totalorder %s28, 0
      %p69 = por %p67, %p68
      %s71 = sadd.s32 %s70, 1
      %p74 = scmp.eq.s32.totalorder %s22, 1
      %p75 = scmp.ne.s32.totalorder %s70, %s72
      %p76 = scmp.eq.s32.totalorder %s22, 0
      %p77 = por %p75, %p76
      %p78 = scmp.ne.s32.totalorder %s70, %s72
      %p79 = scmp.eq.s32.totalorder %s27, 1
      %p80 = por %p78, %p79
      %p81 = scmp.ne.s32.totalorder %s72, %s73
      %p82 = scmp.eq.s32.totalorder %s27, 0
      %p83 = por %p81, %p82
      %p84 = scmp.ne.s32.totalorder %s72, %s73
      %p85 = scmp.eq.s32.totalorder %s28, 1
      %p86 = por %p84, %p85
      %p88 = scmp.ne.s32.totalorder %s73, %s87
      %p89 = scmp.eq.s32.totalorder %s28, 0
      %p90 = por %p88, %p89
      %s92 = sadd.s32 %s91, 1
      %p95 = scmp.eq.s32.totalorder %s22, 1
      %p96 = scmp.ne.s32.totalorder %s91, %s93
      %p97 = scmp.eq.s32.totalorder %s22, 0
      %p98 = por %p96, %p97
      %p99 = scmp.ne.s32.totalorder %s91, %s93
      %p100 = scmp.eq.s32.totalorder %s27, 1
      %p101 = por %p99, %p100
      %p102 = scmp.ne.s32.totalorder %s93, %s94
      %p103 = scmp.eq.s32.totalorder %s27, 0
      %p104 = por %p102, %p103
      %p105 = scmp.ne.s32.totalorder %s93, %s94
      %p106 = scmp.eq.s32.totalorder %s28, 1
      %p107 = por %p105, %p106
      %p109 = scmp.ne.s32.totalorder %s94, %s108
      %p110 = scmp.eq.s32.totalorder %s28, 0
      %p111 = por %p109, %p110
      %s112 = ssub.s32 %s29, %s41
      %s113 = ssub.s32 %s30, %s37
      %s114 = sor.u32 %s112, %s113
      %p115 = scmp.eq.s32.totalorder %s114, 0
      %s117 = sadd.s32 %s116, 1
      %s118 = scalar_select %p115, %s116, %s117
      %p121 = pneg %p115
      %p122 = scmp.eq.s32.totalorder %s22, 1
      %p123 = por %p121, %p122
      %p124 = scmp.ne.s32.totalorder %s116, %s119
      %p125 = scmp.eq.s32.totalorder %s22, 0
      %p126 = por %p124, %p125
      %p127 = scmp.ne.s32.totalorder %s116, %s119
      %p128 = scmp.eq.s32.totalorder %s27, 1
      %p129 = por %p127, %p128
      %p130 = scmp.ne.s32.totalorder %s119, %s120
      %p131 = scmp.eq.s32.totalorder %s27, 0
      %p132 = por %p130, %p131
      %p133 = scmp.ne.s32.totalorder %s119, %s120
      %p134 = scmp.eq.s32.totalorder %s28, 1
      %p135 = por %p133, %p134
      %p137 = scmp.ne.s32.totalorder %s120, %s136
      %p138 = scmp.eq.s32.totalorder %s28, 0
      %p139 = por %p137, %p138
      %s140 = ssub.s32 %s29, %s41
      %s141 = ssub.s32 %s30, %s37
      %s142 = sor.u32 %s140, %s141
      %p143 = scmp.eq.s32.totalorder %s142, 0
      %s145 = sadd.s32 %s144, 1
      %s146 = scalar_select %p143, %s144, %s145
      %p149 = pneg %p143
      %p150 = scmp.eq.s32.totalorder %s22, 1
      %p151 = por %p149, %p150
      %p152 = scmp.ne.s32.totalorder %s144, %s147
      %p153 = scmp.eq.s32.totalorder %s22, 0
      %p154 = por %p152, %p153
      %p155 = scmp.ne.s32.totalorder %s144, %s147
      %p156 = scmp.eq.s32.totalorder %s27, 1
      %p157 = por %p155, %p156
      %p158 = scmp.ne.s32.totalorder %s147, %s148
      %p159 = scmp.eq.s32.totalorder %s27, 0
      %p160 = por %p158, %p159
      %p161 = scmp.ne.s32.totalorder %s147, %s148
      %p162 = scmp.eq.s32.totalorder %s28, 1
      %p163 = por %p161, %p162
      %p165 = scmp.ne.s32.totalorder %s148, %s164
      %p166 = scmp.eq.s32.totalorder %s28, 0
      %p167 = por %p165, %p166
      %s168 = ssub.s32 %s29, %s41
      %s169 = ssub.s32 %s30, %s37
      %s170 = sor.u32 %s168, %s169
      %p171 = scmp.eq.s32.totalorder %s170, 0
      %s173 = sadd.s32 %s172, 1
      %s174 = scalar_select %p171, %s172, %s173
      %p177 = pneg %p171
      %p178 = scmp.eq.s32.totalorder %s22, 1
      %p179 = por %p177, %p178
      %p180 = scmp.ne.s32.totalorder %s172, %s175
      %p181 = scmp.eq.s32.totalorder %s22, 0
      %p182 = por %p180, %p181
      %p183 = scmp.ne.s32.totalorder %s172, %s175
      %p184 = scmp.eq.s32.totalorder %s27, 1
      %p185 = por %p183, %p184
      %p186 = scmp.ne.s32.totalorder %s175, %s176
      %p187 = scmp.eq.s32.totalorder %s27, 0
      %p188 = por %p186, %p187
      %p189 = scmp.ne.s32.totalorder %s175, %s176
      %p190 = scmp.eq.s32.totalorder %s28, 1
      %p191 = por %p189, %p190
      %p193 = scmp.ne.s32.totalorder %s176, %s192
      %p194 = scmp.eq.s32.totalorder %s28, 0
      %p195 = por %p193, %p194
      %p196 = scmp.le.s32.totalorder 1, %s22
      %p197 = scmp.lt.s32.totalorder %s22, 3
      %p198 = pnand %p196, %p197
      %p199 = pneg %p198
      // Predicated region
      $region9: #{tpu_custom_call.1} parent=5 // pred_check
        _
      $region10: #{tpu_custom_call.1} parent=5 // pred_check_branch
        %201 = sbr.rel (%p198) target = $region12
      $region11: #{tpu_custom_call.1} parent=5 // pred_region
        %s202 = ssub.s32 %s22, 1
        // Predicated region
        $region13: #{tpu_custom_call.1} parent=11 // pred_check
          %p203 = pneg %p83
        $region14: #{tpu_custom_call.1} parent=11 // pred_check_branch
          %205 = sbr.rel (%p203) target = $region16
        $region15: #{tpu_custom_call.1} parent=11 // pred_region
          %207 = vsyncadd [#allocation6], 0
          %s208 = sshll.u32 %s1, 4
          %s209 = int_to_ptr.hbm [resolvable:$true] %s208
          %s210 = sshll.u32 [#allocation5], 4
          %s211 = int_to_ptr.vmem [resolvable:$true] %s210
          %216 = dma.hbm_to_vmem [thread:$0]  %s209, 256, %s211, [#allocation6], 64, 64, 4
        $region16: #{tpu_custom_call.1} parent=11 // pred_fallthru
          _
        // Predicated region
        $region17: #{tpu_custom_call.1} parent=11 // pred_check
          %p217 = pneg %p104
        $region18: #{tpu_custom_call.1} parent=11 // pred_check_branch
          %219 = sbr.rel (%p217) target = $region20
        $region19: #{tpu_custom_call.1} parent=11 // pred_region
          _
        $region20: #{tpu_custom_call.1} parent=11 // pred_fallthru
          _
      $region12: #{tpu_custom_call.1} parent=5 // pred_fallthru
        _
      %p220 = scmp.lt.s32.totalorder %s22, 2
      // Predicated region
      $region21: #{tpu_custom_call.1} parent=5 // pred_check
        %p221 = pneg %p220
      $region22: #{tpu_custom_call.1} parent=5 // pred_check_branch
        %223 = sbr.rel (%p221) target = $region24
      $region23: #{tpu_custom_call.1} parent=5 // pred_region
        // Predicated region
        $region25: #{tpu_custom_call.1} parent=23 // pred_check
          %p224 = pneg %p56
        $region26: #{tpu_custom_call.1} parent=23 // pred_check_branch
          %226 = sbr.rel (%p224) target = $region28
        $region27: #{tpu_custom_call.1} parent=23 // pred_region
          %s227 = sand.u32 %s46, 1
          %s228 = scalar_lea.sflag [#allocation3], %s227
          %s229 = sand.u32 %s46, 1
          %s230 = smul.addr %s229, 4
          %s231 = scalar_lea.vmem [#allocation2], %s230
          %233 = vsyncadd %s228, 0
          %s234 = sadd.s32 %s30, %s29
          %s235 = smul.addr %s234, 4
          %s236 = scalar_lea.hbm %s0, %s235
          %s238 = sshll.u32 %s236, 4
          %s239 = int_to_ptr.hbm [resolvable:$true] %s238
          %s240 = sshll.u32 %s231, 4
          %s241 = int_to_ptr.vmem [resolvable:$true] %s240
          %243 = dma.hbm_to_vmem [thread:$0]  %s239, 64, %s241, %s228
        $region28: #{tpu_custom_call.1} parent=23 // pred_fallthru
          _
      $region24: #{tpu_custom_call.1} parent=5 // pred_fallthru
        _
      %p244 = scmp.le.s32.totalorder 1, %s22
      %p245 = scmp.lt.s32.totalorder %s22, 3
      %p246 = pnand %p244, %p245
      %p247 = pneg %p246
      // Predicated region
      $region29: #{tpu_custom_call.1} parent=5 // pred_check
        _
      $region30: #{tpu_custom_call.1} parent=5 // pred_check_branch
        %249 = sbr.rel (%p246) target = $region32
      $region31: #{tpu_custom_call.1} parent=5 // pred_region
        %s250 = ssub.s32 %s22, 1
        %s251 = sand.u32 %s49, 1
        %s252 = scalar_lea.sflag [#allocation3], %s251
        %s253 = sand.u32 %s49, 1
        %s254 = smul.addr %s253, 4
        %s255 = scalar_lea.vmem [#allocation2], %s254
        // Predicated region
        $region33: #{tpu_custom_call.1} parent=31 // pred_check
          %p256 = pneg %p62
        $region34: #{tpu_custom_call.1} parent=31 // pred_check_branch
          %258 = sbr.rel (%p256) target = $region36
        $region35: #{tpu_custom_call.1} parent=31 // pred_region
          %260 = dma.done %s252, 64
        $region36: #{tpu_custom_call.1} parent=31 // pred_fallthru
          _
        // Predicated region
        $region37: #{tpu_custom_call.1} parent=31 // pred_check
          %p261 = pneg %p83
        $region38: #{tpu_custom_call.1} parent=31 // pred_check_branch
          %263 = sbr.rel (%p261) target = $region40
        $region39: #{tpu_custom_call.1} parent=31 // pred_region
          %265 = dma.done [#allocation6], 256
        $region40: #{tpu_custom_call.1} parent=31 // pred_fallthru
          _
        %s266 = sand.u32 %s49, 1
        %s267 = scalar_lea.sflag [#allocation3], %s266
        %s268 = sand.u32 %s49, 1
        %s269 = smul.addr %s268, 4
        %s270 = scalar_lea.vmem [#allocation2], %s269
        %p271 = pneg %p62
        %p272 = pneg %p59
        %p273 = pneg %p83
        %p274 = pneg %p80
        %p275 = pneg %p104
        %p276 = pneg %p101
        %p277 = pneg %p132
        %p278 = pneg %p129
        %s279 = sand.u32 %s119, 1
        %s280 = scalar_lea.sflag [#allocation4], %s279
        %s281 = sand.u32 %s119, 1
        %s282 = smul.addr %s281, 4
        %s283 = scalar_lea.vmem [#allocation7], %s282
        %p284 = pneg %p160
        %p285 = pneg %p157
        %s286 = sand.u32 %s27, 1
        %s287 = scalar_lea.sflag [#allocation9], %s286
        %s288 = sand.u32 %s147, 1
        %s289 = smul.addr %s288, 4
        %s290 = scalar_lea.vmem [#allocation8], %s289
        %p291 = pneg %p188
        %p292 = pneg %p185
        %s293 = sand.u32 %s27, 1
        %s294 = scalar_lea.sflag [#allocation9], %s293
        %s295 = sand.u32 %s175, 1
        %s296 = smul.addr %s295, 4
        %s297 = scalar_lea.vmem [#allocation10], %s296
        %v299 = vld [vmem:[%s255] sm:$0xf]
        %v300 = vld [vmem:[#allocation5] sm:$0xf]
        %v301 = vld [vmem:[#allocation5 + $0x4] sm:$0xf]
        %v302 = vld [vmem:[#allocation5 + $0x8] sm:$0xf]
        %v303 = vld [vmem:[#allocation5 + $0xc] sm:$0xf]
        %v304 = vld [vmem:[%s2] sm:$0x1]
        %v306 = vperm.slane %v304, 0
        %v312 = vunpack.c.l.b16 %v300
        %v313 = vunpack.c.l.b16 %v301
        %v314 = vunpack.c.l.b16 %v302
        %v315 = vunpack.c.l.b16 %v303
        %v316 = vpack.c.b16 %v313, %v312
        %v317 = vpack.c.b16 %v315, %v314
        %vm320 = vcmask 261120
        %v322 = vsel %vm320, %v299, 0
        %324 = vmatpush.bf16.msra.mxu0 0
        %325 = vmatpush.bf16.msra.mxu0 0
        %326 = vmatpush.bf16.msra.mxu0 0
        %327 = vmatpush.bf16.msra.mxu0 0
        %328 = vmatpush.bf16.msra.mxu0 0
        %329 = vmatpush.bf16.msra.mxu0 0
        %330 = vmatpush.bf16.msra.mxu0 %v317
        %331 = vmatpush.bf16.msra.mxu0 %v316
        %332 = vmatmul.bf16.gmra.mxu0 %v322
        %v333 = vpop.f32.mrf.mxu0
        %v334 = vadd.f32 %v306, %v333
        %v335 = vpop.f32.mrf.mxu0
        %336 = vdwg.mxu0
        %v337 = vpack.c.bf16 %v334, %v334
        %vm338 = vcmask 257024
        %339 = vst.msk [vmem:[%s283] sm:$0xf] %vm338, %v337
        %341 = vrot.lane.b32.xlu0 %v337, 96
        %v342 = vpop.permute.xlu0 %341
        %344 = vst.msk [vmem:[%s290] sm:$0xf] %vm338, %v342
        %345 = vrot.lane.b32.xlu0 %v337, 64
        %v346 = vpop.permute.xlu0 %345
        %348 = vst.msk [vmem:[%s297] sm:$0xf] %vm338, %v346
        %s349 = sand.u32 %s119, 1
        %s350 = scalar_lea.sflag [#allocation4], %s349
        %s351 = sand.u32 %s119, 1
        %s352 = smul.addr %s351, 4
        %s353 = scalar_lea.vmem [#allocation7], %s352
        %s354 = sand.u32 %s27, 1
        %s355 = scalar_lea.sflag [#allocation9], %s354
        %s356 = sand.u32 %s147, 1
        %s357 = smul.addr %s356, 4
        %s358 = scalar_lea.vmem [#allocation8], %s357
        %s359 = sand.u32 %s27, 1
        %s360 = scalar_lea.sflag [#allocation9], %s359
        %s361 = sand.u32 %s175, 1
        %s362 = smul.addr %s361, 4
        %s363 = scalar_lea.vmem [#allocation10], %s362
        // Predicated region
        $region41: #{tpu_custom_call.1} parent=31 // pred_check
          %p364 = pneg %p129
        $region42: #{tpu_custom_call.1} parent=31 // pred_check_branch
          %366 = sbr.rel (%p364) target = $region44
        $region43: #{tpu_custom_call.1} parent=31 // pred_region
          %368 = vsyncadd %s350, 0
          %s369 = sadd.s32 %s32, %s31
          %s370 = smul.addr %s369, 4
          %s371 = scalar_lea.hbm %s3, %s370
          %s373 = sshll.u32 %s353, 4
          %s374 = int_to_ptr.vmem [resolvable:$true] %s373
          %s375 = sshll.u32 %s371, 4
          %s376 = int_to_ptr.hbm [resolvable:$true] %s375
          %378 = dma.vmem_to_hbm [thread:$0]  %s374, 64, %s376, %s350
        $region44: #{tpu_custom_call.1} parent=31 // pred_fallthru
          _
        // Predicated region
        $region45: #{tpu_custom_call.1} parent=31 // pred_check
          %p379 = pneg %p157
        $region46: #{tpu_custom_call.1} parent=31 // pred_check_branch
          %381 = sbr.rel (%p379) target = $region48
        $region47: #{tpu_custom_call.1} parent=31 // pred_region
          %383 = vsyncadd %s355, 0
          %s384 = sadd.s32 %s32, %s31
          %s385 = smul.addr %s384, 4
          %s386 = scalar_lea.hbm %s4, %s385
          %s388 = sshll.u32 %s358, 4
          %s389 = int_to_ptr.vmem [resolvable:$true] %s388
          %s390 = sshll.u32 %s386, 4
          %s391 = int_to_ptr.hbm [resolvable:$true] %s390
          %393 = dma.vmem_to_hbm [thread:$0]  %s389, 64, %s391, %s355
        $region48: #{tpu_custom_call.1} parent=31 // pred_fallthru
          _
        // Predicated region
        $region49: #{tpu_custom_call.1} parent=31 // pred_check
          %p394 = pneg %p185
        $region50: #{tpu_custom_call.1} parent=31 // pred_check_branch
          %396 = sbr.rel (%p394) target = $region52
        $region51: #{tpu_custom_call.1} parent=31 // pred_region
          %398 = vsyncadd %s360, 0
          %s399 = sadd.s32 %s32, %s31
          %s400 = smul.addr %s399, 4
          %s401 = scalar_lea.hbm %s5, %s400
          %s403 = sshll.u32 %s363, 4
          %s404 = int_to_ptr.vmem [resolvable:$true] %s403
          %s405 = sshll.u32 %s401, 4
          %s406 = int_to_ptr.hbm [resolvable:$true] %s405
          %408 = dma.vmem_to_hbm [thread:$0]  %s404, 64, %s406, %s360
        $region52: #{tpu_custom_call.1} parent=31 // pred_fallthru
          _
      $region32: #{tpu_custom_call.1} parent=5 // pred_fallthru
        _
      %p409 = scmp.le.s32.totalorder 2, %s22
      // Predicated region
      $region53: #{tpu_custom_call.1} parent=5 // pred_check
        %p410 = pneg %p409
      $region54: #{tpu_custom_call.1} parent=5 // pred_check_branch
        %412 = sbr.rel (%p410) target = $region56
      $region55: #{tpu_custom_call.1} parent=5 // pred_region
        %s413 = ssub.s32 %s22, 2
        // Predicated region
        $region57: #{tpu_custom_call.1} parent=55 // pred_check
          %p414 = pneg %p135
        $region58: #{tpu_custom_call.1} parent=55 // pred_check_branch
          %416 = sbr.rel (%p414) target = $region60
        $region59: #{tpu_custom_call.1} parent=55 // pred_region
          %s417 = sand.u32 %s120, 1
          %s418 = scalar_lea.sflag [#allocation4], %s417
          %s419 = sand.u32 %s120, 1
          %s420 = smul.addr %s419, 4
          %s421 = scalar_lea.vmem [#allocation7], %s420
          %423 = dma.done %s418, 64
        $region60: #{tpu_custom_call.1} parent=55 // pred_fallthru
          _
        // Predicated region
        $region61: #{tpu_custom_call.1} parent=55 // pred_check
          %p424 = pneg %p163
        $region62: #{tpu_custom_call.1} parent=55 // pred_check_branch
          %426 = sbr.rel (%p424) target = $region64
        $region63: #{tpu_custom_call.1} parent=55 // pred_region
          %s427 = sand.u32 %s28, 1
          %s428 = scalar_lea.sflag [#allocation9], %s427
          %s429 = sand.u32 %s148, 1
          %s430 = smul.addr %s429, 4
          %s431 = scalar_lea.vmem [#allocation8], %s430
          %433 = dma.done %s428, 64
        $region64: #{tpu_custom_call.1} parent=55 // pred_fallthru
          _
        // Predicated region
        $region65: #{tpu_custom_call.1} parent=55 // pred_check
          %p434 = pneg %p191
        $region66: #{tpu_custom_call.1} parent=55 // pred_check_branch
          %436 = sbr.rel (%p434) target = $region68
        $region67: #{tpu_custom_call.1} parent=55 // pred_region
          %s437 = sand.u32 %s28, 1
          %s438 = scalar_lea.sflag [#allocation9], %s437
          %s439 = sand.u32 %s176, 1
          %s440 = smul.addr %s439, 4
          %s441 = scalar_lea.vmem [#allocation10], %s440
          %443 = dma.done %s438, 64
        $region68: #{tpu_custom_call.1} parent=55 // pred_fallthru
          _
      $region56: #{tpu_custom_call.1} parent=5 // pred_fallthru
        _
    $region6: #{tpu_custom_call.1} parent=1 // loop_footer
      %s26 = sadd.s32 1, %s22
    $region7: #{tpu_custom_call.1} parent=1 // loop_footer_branch
      %21 = sbr.rel target = $region3
    $region8: #{tpu_custom_call.1} parent=1 // loop_exit
      _
    %444 = vsyncpa [#allocation3], 1
    %s445 = scalar_lea.sflag [#allocation3], 1
    %446 = vsyncpa %s445, 1
    %447 = vsyncpa [#allocation6], 1
    %448 = vsyncpa [#allocation4], 1
    %s449 = scalar_lea.sflag [#allocation4], 1
    %450 = vsyncpa %s449, 1
    %451 = vsyncpa [#allocation9], 1
    %s452 = scalar_lea.sflag [#allocation9], 1
    %453 = vsyncpa %s452, 1

</llo_original>
